<compile_context>
chip_gen: v7x
topology: tpu7x:2x2x1
jax: 0.10.0
libtpu: 0.0.40
codegen_flags: <defaults>
</compile_context>

<pallas_src>
import functools

import jax
import jax.numpy as jnp
from jax.experimental import pallas as pl
from jax.experimental.pallas import tpu as pltpu


def _round_up(x, m):
    return (x + m - 1) // m * m


def _linear_bias_kernel(x_ref, w_ref, b_ref, o_ref, *, compute_dtype):
    # x_ref: (tm, K)  w_ref: (K, tn)  b_ref: (1, tn) f32  o_ref: (tm, tn)
    a = x_ref[...].astype(compute_dtype)
    w = w_ref[...].astype(compute_dtype)
    acc = jnp.dot(a, w, preferred_element_type=jnp.float32)
    o_ref[...] = (acc + b_ref[...]).astype(o_ref.dtype)


def _linear_bias_kacc_kernel(x_ref, w_ref, b_ref, o_ref, acc_ref, *,
                             compute_dtype):
    # K-tiled variant: grid = (gn, gm, gk), reduction axis last.
    k = pl.program_id(2)

    @pl.when(k == 0)
    def _():
        acc_ref[...] = jnp.zeros_like(acc_ref)

    a = x_ref[...].astype(compute_dtype)
    w = w_ref[...].astype(compute_dtype)
    acc_ref[...] += jnp.dot(a, w, preferred_element_type=jnp.float32)

    @pl.when(k == pl.num_programs(2) - 1)
    def _():
        o_ref[...] = (acc_ref[...] + b_ref[...]).astype(o_ref.dtype)


def frame_level_classification_head(
        xin, weight, bias, num_streams, num_tokens, *,
        tile_m=512, tile_n=1024, tile_k=None,
        compute_dtype=None, out_dtype=None,
        vmem_budget_bytes=40 * 1024 * 1024):
    """xin: (B, T, model_dim); weight: (model_dim, num_streams*num_tokens)
    (torch Linear.weight transposed); bias: (num_streams*num_tokens,).
    Returns (B, T, num_streams, num_tokens)."""
    B, T, K = xin.shape
    N = num_streams * num_tokens
    assert weight.shape == (K, N)
    assert bias.shape == (N,)

    M = B * T
    x2d = xin.reshape(M, K)                       # contiguous, free reshape
    out_dtype = xin.dtype if out_dtype is None else out_dtype
    if compute_dtype is None:
        # No implicit downcast: preserve the module's numerics by default.
        compute_dtype = jnp.result_type(xin.dtype, weight.dtype)

    # Lane-dense output: pad the weight/bias column dim to a multiple of 128
    # only when the config is not already lane aligned.
    Np = N if N % 128 == 0 else _round_up(N, 128)
    if Np != N:
        weight = jnp.pad(weight, ((0, 0), (0, Np - N)))
        bias = jnp.pad(bias, ((0, Np - N),))
    b2d = bias.astype(jnp.float32).reshape(1, Np)

    x_isz = x2d.dtype.itemsize
    w_isz = weight.dtype.itemsize
    out_isz = jnp.dtype(out_dtype).itemsize

    def vmem_bytes(tm_, tn_, tk_):
        return (2 * tm_ * tk_ * x_isz          # activation tile (double buf)
                + 2 * tk_ * tn_ * w_isz        # weight tile (double buf)
                + 2 * tm_ * tn_ * out_isz      # output tile (double buf)
                + tm_ * tn_ * 4                # f32 matmul result / acc
                + 2 * tn_ * 4)                 # bias row

    # ---- M / N tile selection (no host-side M padding) ------------------
    if M < 8:
        tm = M                                  # block == full dim, legal
    else:
        tm = max(8, (min(tile_m, M) // 8) * 8)  # multiple of 8 sublanes
    tn = Np if Np <= tile_n else (tile_n // 128) * 128

    fits = vmem_bytes(tm, tn, K) <= vmem_budget_bytes
    while not fits and (tm > 256 or tn > 512):
        if tm > 256:
            tm = max(256, (tm // 2 // 8) * 8)
        else:
            tn = max(512, (tn // 2 // 128) * 128)
        fits = vmem_bytes(tm, tn, K) <= vmem_budget_bytes

    gm = pl.cdiv(M, tm)
    gn = pl.cdiv(Np, tn)

    force_ktile = tile_k is not None and tile_k < K
    ce = pl.CostEstimate(
        flops=2 * M * K * N,
        transcendentals=0,
        bytes_accessed=int(M * K * x_isz + K * Np * w_isz
                           + M * Np * out_isz + Np * 4))

    if fits and not force_ktile:
        # -------- single K-pass path (typical config) --------------------
        vmem_limit = int(min(max(vmem_bytes(tm, tn, K) * 2, 32 << 20),
                             56 << 20))
        out = pl.pallas_call(
            functools.partial(_linear_bias_kernel,
                              compute_dtype=compute_dtype),
            out_shape=jax.ShapeDtypeStruct((M, Np), out_dtype),
            grid_spec=pltpu.PrefetchScalarGridSpec(
                num_scalar_prefetch=0,
                grid=(gn, gm),
                in_specs=[
                    pl.BlockSpec((tm, K), lambda j, i: (i, 0)),   # acts
                    pl.BlockSpec((K, tn), lambda j, i: (0, j)),   # weight col
                    pl.BlockSpec((1, tn), lambda j, i: (0, j)),   # bias (f32)
                ],
                out_specs=pl.BlockSpec((tm, tn), lambda j, i: (i, j)),
            ),
            compiler_params=pltpu.CompilerParams(
                dimension_semantics=("parallel", "parallel"),
                vmem_limit_bytes=vmem_limit),
            cost_estimate=ce,
        )(x2d, weight, b2d)
    else:
        # -------- K-tiled path (very large model_dim) ---------------------
        if tile_k is not None:
            tk = max(128, (min(tile_k, K) // 128) * 128)
        else:
            tk = max(512, (_round_up(K, 128) // 2 // 128) * 128)
            while vmem_bytes(tm, tn, tk) > vmem_budget_bytes and tk > 512:
                tk = max(512, (tk // 2 // 128) * 128)
        tk = min(tk, _round_up(K, 128))
        gk = pl.cdiv(K, tk)
        Kp = gk * tk
        if Kp != K:
            # Zero-pad the reduction dim so ragged K blocks never feed the
            # accumulator garbage.
            x2d = jnp.pad(x2d, ((0, 0), (0, Kp - K)))
            weight = jnp.pad(weight, ((0, Kp - K), (0, 0)))

        vmem_limit = int(min(max(vmem_bytes(tm, tn, tk) * 2, 32 << 20),
                             56 << 20))
        out = pl.pallas_call(
            functools.partial(_linear_bias_kacc_kernel,
                              compute_dtype=compute_dtype),
            out_shape=jax.ShapeDtypeStruct((M, Np), out_dtype),
            grid_spec=pltpu.PrefetchScalarGridSpec(
                num_scalar_prefetch=0,
                grid=(gn, gm, gk),
                in_specs=[
                    pl.BlockSpec((tm, tk), lambda j, i, k: (i, k)),
                    pl.BlockSpec((tk, tn), lambda j, i, k: (k, j)),
                    pl.BlockSpec((1, tn), lambda j, i, k: (0, j)),
                ],
                out_specs=pl.BlockSpec((tm, tn), lambda j, i, k: (i, j)),
                scratch_shapes=[pltpu.VMEM((tm, tn), jnp.float32)],
            ),
            compiler_params=pltpu.CompilerParams(
                dimension_semantics=("parallel", "parallel", "arbitrary"),
                vmem_limit_bytes=vmem_limit),
            cost_estimate=ce,
        )(x2d, weight, b2d)

    if Np != N:
        out = out[:, :N]
    return out.reshape(B, T, num_streams, num_tokens)


def reference(xin, weight, bias, num_streams, num_tokens):
    B, T, _ = xin.shape
    y = jnp.einsum("btk,kn->btn", xin.astype(jnp.float32),
                   weight.astype(jnp.float32)) + bias.astype(jnp.float32)
    return y.reshape(B, T, num_streams, num_tokens)


if __name__ == "__main__":
    key = jax.random.PRNGKey(0)

    # ---- test 1: f32, single K-pass path (module defaults, small shapes) --
    B, T = 2, 8
    model_dim = 32
    num_tokens = 16
    num_streams = 8

    kx, kw, kb, kx2, kw2, kb2 = jax.random.split(key, 6)
    xin = jax.random.normal(kx, (B, T, model_dim), dtype=jnp.float32)
    # nn.Linear(model_dim, num_tokens*num_streams): torch weight is (out, in);
    # stored transposed (in, out) for the kernel's x @ W layout.
    w = jax.random.normal(kw, (model_dim, num_tokens * num_streams),
                          dtype=jnp.float32) * 0.02
    b = jax.random.normal(kb, (num_tokens * num_streams,),
                          dtype=jnp.float32) * 0.01

    ref = reference(xin, w, b, num_streams, num_tokens)

    data = {"decoder_out": xin}          # mirrors the module's dict interface
    probs = frame_level_classification_head(
        data["decoder_out"], w, b, num_streams, num_tokens)
    probs = jax.block_until_ready(probs)
    data["predicted_tokens"] = probs
    assert probs.shape == (B, T, num_streams, num_tokens)
    assert jnp.allclose(probs, ref, atol=1e-4, rtol=1e-4)

    # ---- test 2: bf16 MXU inputs, f32 accumulation ------------------------
    probs_bf16 = frame_level_classification_head(
        xin.astype(jnp.bfloat16), w.astype(jnp.bfloat16), b,
        num_streams, num_tokens,
        compute_dtype=jnp.bfloat16, out_dtype=jnp.float32)
    probs_bf16 = jax.block_until_ready(probs_bf16)
    assert probs_bf16.shape == (B, T, num_streams, num_tokens)
    assert jnp.allclose(probs_bf16, ref, atol=5e-2, rtol=5e-2)

    # ---- test 3: forced K-tiled accumulator path (with ragged-K padding) --
    model_dim2 = 200                      # not a multiple of 128 -> K padding
    xin2 = jax.random.normal(kx2, (B, T, model_dim2), dtype=jnp.float32)
    w2 = jax.random.normal(kw2, (model_dim2, num_tokens * num_streams),
                           dtype=jnp.float32) * 0.02
    b2 = jax.random.normal(kb2, (num_tokens * num_streams,),
                           dtype=jnp.float32) * 0.01
    ref2 = reference(xin2, w2, b2, num_streams, num_tokens)
    probs2 = frame_level_classification_head(
        xin2, w2, b2, num_streams, num_tokens, tile_k=128)
    probs2 = jax.block_until_ready(probs2)
    assert probs2.shape == (B, T, num_streams, num_tokens)
    assert jnp.allclose(probs2, ref2, atol=1e-4, rtol=1e-4)

    print("KERNEL_OK")
</pallas_src>

<mosaic_0001>
module attributes {stable_mosaic.version = 11 : i64} {
  func.func @_linear_bias_kernel(%arg0: i32, %arg1: i32, %arg2: memref<16x32xf32, #tpu.memory_space<vmem>>, %arg3: memref<32x128xf32, #tpu.memory_space<vmem>>, %arg4: memref<1x128xf32, #tpu.memory_space<vmem>>, %arg5: memref<16x128xf32, #tpu.memory_space<vmem>>) attributes {dimension_semantics = [#tpu.dimension_semantics<parallel>, #tpu.dimension_semantics<parallel>], iteration_bounds = array<i64: 1, 1>, scalar_prefetch = 0 : i64, scratch_operands = 0 : i64, tpu.core_type = #tpu.core_type<tc>, window_params = [{transform_indices = @transform_0, window_bounds = array<i64: 16, 32>}, {transform_indices = @transform_1, window_bounds = array<i64: 32, 128>}, {transform_indices = @transform_2, window_bounds = array<i64: 1, 128>}, {transform_indices = @transform_3, window_bounds = array<i64: 16, 128>}]} {
    %c0 = arith.constant 0 : index
    %c0_0 = arith.constant 0 : index
    %0 = vector.load %arg2[%c0, %c0_0] : memref<16x32xf32, #tpu.memory_space<vmem>>, vector<16x32xf32>
    %c0_1 = arith.constant 0 : index
    %c0_2 = arith.constant 0 : index
    %1 = vector.load %arg3[%c0_1, %c0_2] : memref<32x128xf32, #tpu.memory_space<vmem>>, vector<32x128xf32>
    %cst = arith.constant dense<0.000000e+00> : vector<16x128xf32>
    %2 = tpu.matmul %0, %1, %cst {dimension_numbers = #tpu.dot_dimension_numbers<[1], [0], [0], [1], [0, 0, 1, 1], [], []>} : vector<16x32xf32>, vector<32x128xf32>, vector<16x128xf32> -> vector<16x128xf32>
    %c0_3 = arith.constant 0 : index
    %c0_4 = arith.constant 0 : index
    %3 = vector.load %arg4[%c0_3, %c0_4] : memref<1x128xf32, #tpu.memory_space<vmem>>, vector<1x128xf32>
    %4 = vector.broadcast %3 : vector<1x128xf32> to vector<16x128xf32>
    %5 = arith.addf %2, %4 : vector<16x128xf32>
    %c0_5 = arith.constant 0 : index
    %c0_6 = arith.constant 0 : index
    %6 = vector.load %arg5[%c0_5, %c0_6] : memref<16x128xf32, #tpu.memory_space<vmem>>, vector<16x128xf32>
    tpu.vector_store %arg5[%c0_5, %c0_6], %5 {strides = array<i32>} : memref<16x128xf32, #tpu.memory_space<vmem>>, vector<16x128xf32>,
    return
  }
  func.func @transform_0(%arg0: i32, %arg1: i32) -> (i32, i32) {
    %c0_i32 = arith.constant 0 : i32
    %c0_i32_0 = arith.constant 0 : i32
    return %arg1, %c0_i32 : i32, i32
  }
  func.func @transform_1(%arg0: i32, %arg1: i32) -> (i32, i32) {
    %c0_i32 = arith.constant 0 : i32
    %c0_i32_0 = arith.constant 0 : i32
    return %c0_i32, %arg0 : i32, i32
  }
  func.func @transform_2(%arg0: i32, %arg1: i32) -> (i32, i32) {
    %c0_i32 = arith.constant 0 : i32
    %c0_i32_0 = arith.constant 0 : i32
    return %c0_i32, %arg0 : i32, i32
  }
  func.func @transform_3(%arg0: i32, %arg1: i32) -> (i32, i32) {
    %c0_i32 = arith.constant 0 : i32
    return %arg1, %arg0 : i32, i32
  }
}

</mosaic_0001>

<llo_original>
// kernel: tpu_custom_call.1
$region0: #{tpu_custom_call.1}
  #allocation0 [shape = 'u32[]', space=smem, size = 0x4, offset = 0x4, fixed_abs, tag = 'smem constant byte address 0x4 - core index']
  #allocation1 [shape = 'u32[144,128]{1,0:T(1,128)}', space=vmem, size = 0x12000, scoped, tag = 'internal scratch']
  %s0 = inlined_call_operand.hbm [shape: f32[16,32], index: 0, kind: input, shape index: {}]
  %s1 = inlined_call_operand.hbm [shape: f32[32,128], index: 1, kind: input, shape index: {}]
  %s2 = inlined_call_operand.vmem [shape: f32[1,128], index: 2, kind: input, shape index: {}]
  %s3 = inlined_call_operand.hbm [shape: f32[16,128], index: 3, kind: output, shape index: {}]
  %s4 = sld [smem:[#allocation0]]
  $region30: #{tpu_custom_call.1} parent=0
    _
  %s6 = ssub.s32 1, %s4
  %s7 = scalar_select 0, %s6, %s4
  $region1: #{tpu_custom_call.1} parent=0
    #allocation2 [shape = 'u8[8192]{0}', space=vmem, size = 0x2000, scoped, tag = 'input window, operand 0, single buffered']
    #allocation3 [shape = 's32[1]{0}', space=sflag, size = 0x4, scoped, tag = 'scoped memory for tpu_custom_call.1']
    #allocation4 [shape = 's32[1]{0}', space=sflag, size = 0x4, scoped, tag = 'scoped memory for tpu_custom_call.1']
    #allocation5 [shape = 'u8[16384]{0}', space=vmem, size = 0x4000, scoped, tag = 'input window, operand 1, single buffered']
    #allocation6 [shape = 's32[1]{0}', space=sflag, size = 0x4, scoped, tag = 'scoped memory for tpu_custom_call.1']
    #allocation7 [shape = 'u8[8192]{0}', space=vmem, size = 0x2000, scoped, tag = 'output window, operand 0, single buffered']
    %8 = vsyncpa [#allocation3], 0
    %9 = vsyncpa [#allocation6], 0
    %10 = vsyncpa [#allocation4], 0
    // Predicated region
    $region2: #{tpu_custom_call.1} parent=1 // pred_check
      _
    $region3: #{tpu_custom_call.1} parent=1 // pred_check_branch
      %12 = sbr.rel (0) target = $region5
    $region4: #{tpu_custom_call.1} parent=1 // pred_region
      %s14 = ssub.s32 256, 256
      %15 = vsyncadd [#allocation3], %s14
      %s16 = sshll.u32 [#allocation2], 4
      %s17 = int_to_ptr.vmem [resolvable:$true] %s16
      %22 = dma.hbm_to_vmem [thread:$0]  %s0, 256, %s17, [#allocation3], 128, 128, 8
    $region5: #{tpu_custom_call.1} parent=1 // pred_fallthru
      _
    // Predicated region
    $region6: #{tpu_custom_call.1} parent=1 // pred_check
      _
    $region7: #{tpu_custom_call.1} parent=1 // pred_check_branch
      %24 = sbr.rel (0) target = $region9
    $region8: #{tpu_custom_call.1} parent=1 // pred_region
      %s26 = ssub.s32 512, 512
      %27 = vsyncadd [#allocation6], %s26
      %s28 = sshll.u32 [#allocation5], 4
      %s29 = int_to_ptr.vmem [resolvable:$true] %s28
      %34 = dma.hbm_to_vmem [thread:$0]  %s1, 512, %s29, [#allocation6], 128, 128, 8
    $region9: #{tpu_custom_call.1} parent=1 // pred_fallthru
      _
    // Predicated region
    $region10: #{tpu_custom_call.1} parent=1 // pred_check
      _
    $region11: #{tpu_custom_call.1} parent=1 // pred_check_branch
      %36 = sbr.rel (0) target = $region13
    $region12: #{tpu_custom_call.1} parent=1 // pred_region
      _
    $region13: #{tpu_custom_call.1} parent=1 // pred_fallthru
      _
    // Predicated region
    $region14: #{tpu_custom_call.1} parent=1 // pred_check
      _
    $region15: #{tpu_custom_call.1} parent=1 // pred_check_branch
      %38 = sbr.rel (0) target = $region17
    $region16: #{tpu_custom_call.1} parent=1 // pred_region
      %39 = dma.done [#allocation3], 256
    $region17: #{tpu_custom_call.1} parent=1 // pred_fallthru
      _
    // Predicated region
    $region18: #{tpu_custom_call.1} parent=1 // pred_check
      _
    $region19: #{tpu_custom_call.1} parent=1 // pred_check_branch
      %41 = sbr.rel (0) target = $region21
    $region20: #{tpu_custom_call.1} parent=1 // pred_region
      %42 = dma.done [#allocation6], 512
    $region21: #{tpu_custom_call.1} parent=1 // pred_fallthru
      _
    %v43 = vld [vmem:[#allocation2] sm:$0xff]
    %v44 = vld [vmem:[#allocation2 + $0x8] sm:$0xff]
    %v45 = vld [vmem:[#allocation5] sm:$0xff]
    %v46 = vld [vmem:[#allocation5 + $0x8] sm:$0xff]
    %v47 = vld [vmem:[#allocation5 + $0x10] sm:$0xff]
    %v48 = vld [vmem:[#allocation5 + $0x18] sm:$0xff]
    %v49 = vld [vmem:[%s2] sm:$0x1]
    %v51 = vlaneseq
    %v52 = vshrl.u32 %v51, 7
    %v53 = vsub.s32 0, %v52
    %v54 = vrot.slane %v49, %v53
    %vm56 = vcmask 261120
    %v58 = vsel %vm56, %v43, 0
    %v61 = vsel %vm56, %v44, 0
    %63 = vmatprep.subr.mxu0 0.0
    %64 = vmatpush1.msra.mxu0 %v45
    %65 = vmatprep.subr.mxu0 0.0
    %66 = vmatpush1.msra.mxu0 %v46
    %67 = vmatprep.subr.mxu0 0.0
    %68 = vmatpush1.msra.mxu0 %v47
    %69 = vmatprep.subr.mxu0 0.0
    %70 = vmatpush1.msra.mxu0 %v48
    %71 = vmatprep.subr.mxu0 0.0
    %72 = vmatpush1.msra.mxu0 0.0
    %73 = vmatprep.subr.mxu0 0.0
    %74 = vmatpush1.msra.mxu0 0.0
    %75 = vmatprep.subr.mxu0 0.0
    %76 = vmatpush1.msra.mxu0 0.0
    %77 = vmatprep.subr.mxu0 0.0
    %78 = vmatpush1.msra.mxu0 0.0
    %79 = vmatprep.subr.mxu0 0.0
    %80 = vmatpush1.msra.mxu0 0.0
    %81 = vmatprep.subr.mxu0 0.0
    %82 = vmatpush1.msra.mxu0 0.0
    %83 = vmatprep.subr.mxu0 0.0
    %84 = vmatpush1.msra.mxu0 0.0
    %85 = vmatprep.subr.mxu0 0.0
    %86 = vmatpush1.msra.mxu0 0.0
    %87 = vmatprep.subr.mxu0 0.0
    %88 = vmatpush1.msra.mxu0 0.0
    %89 = vmatprep.subr.mxu0 0.0
    %90 = vmatpush1.msra.mxu0 0.0
    %91 = vmatprep.subr.mxu0 0.0
    %92 = vmatpush1.msra.mxu0 0.0
    %93 = vmatprep.subr.mxu0 0.0
    %94 = vmatpush1.msra.mxu0 0.0
    %95 = vmatprep.subr.mxu0 0.0
    %96 = vmatpush1.msra.mxu0 0.0
    %97 = vmatprep.subr.mxu0 0.0
    %98 = vmatpush1.msra.mxu0 0.0
    %99 = vmatprep.subr.mxu0 0.0
    %100 = vmatpush1.msra.mxu0 0.0
    %101 = vmatprep.subr.mxu0 0.0
    %102 = vmatpush1.msra.mxu0 0.0
    %103 = vmatprep.subr.mxu0 0.0
    %104 = vmatpush1.msra.mxu0 0.0
    %105 = vmatprep.subr.mxu0 0.0
    %106 = vmatpush1.msra.mxu0 0.0
    %107 = vmatprep.subr.mxu0 0.0
    %108 = vmatpush1.msra.mxu0 0.0
    %109 = vmatprep.subr.mxu0 0.0
    %110 = vmatpush1.msra.mxu0 0.0
    %111 = vmatprep.subr.mxu0 0.0
    %112 = vmatpush1.msra.mxu0 0.0
    %113 = vmatprep.subr.mxu0 0.0
    %114 = vmatpush1.msra.mxu0 0.0
    %115 = vmatprep.subr.mxu0 0.0
    %116 = vmatpush1.msra.mxu0 0.0
    %117 = vmatprep.subr.mxu0 0.0
    %118 = vmatpush1.msra.mxu0 0.0
    %119 = vmatprep.subr.mxu0 0.0
    %120 = vmatpush1.msra.mxu0 0.0
    %121 = vmatprep.subr.mxu0 0.0
    %122 = vmatpush1.msra.mxu0 0.0
    %123 = vmatprep.subr.mxu0 0.0
    %124 = vmatpush1.msra.mxu0 0.0
    %125 = vmatprep.subr.mxu0 0.0
    %126 = vmatpush1.msra.mxu0 0.0
    %127 = vmatprep.mubr.f32.mxu0 0.0
    %128 = vmatmul.mubr.f32.gmra.mrb[0].mxu0 %v58
    %v129 = vpop.f32.mrb[0].mxu0
    %v130 = vadd.f32 %v54, %v129
    %v131 = vpop.f32.mrb[0].mxu0
    %132 = vmatprep.mubr.f32.mxu0 0.0
    %133 = vmatmul.mubr.f32.gmra.mrb[0].mxu0 %v61
    %v134 = vpop.f32.mrb[0].mxu0
    %v135 = vadd.f32 %v54, %v134
    %v136 = vpop.f32.mrb[0].mxu0
    %137 = vdwg.mxu0
    %138 = vst [vmem:[#allocation7] sm:$0xff] %v130
    %139 = vst [vmem:[#allocation7 + $0x8] sm:$0xff] %v135
    // Predicated region
    $region22: #{tpu_custom_call.1} parent=1 // pred_check
      _
    $region23: #{tpu_custom_call.1} parent=1 // pred_check_branch
      %141 = sbr.rel (0) target = $region25
    $region24: #{tpu_custom_call.1} parent=1 // pred_region
      %s143 = ssub.s32 256, 256
      %144 = vsyncadd [#allocation4], %s143
      %s145 = sshll.u32 [#allocation7], 4
      %s146 = int_to_ptr.vmem [resolvable:$true] %s145
      %151 = dma.vmem_to_hbm [thread:$0]  %s146, 256, %s3, [#allocation4], 128, 128, 8
    $region25: #{tpu_custom_call.1} parent=1 // pred_fallthru
      _
    // Predicated region
    $region26: #{tpu_custom_call.1} parent=1 // pred_check
      _
    $region27: #{tpu_custom_call.1} parent=1 // pred_check_branch
      %153 = sbr.rel (0) target = $region29
    $region28: #{tpu_custom_call.1} parent=1 // pred_region
      %154 = dma.done [#allocation4], 256
    $region29: #{tpu_custom_call.1} parent=1 // pred_fallthru
      _
    %155 = vsyncpa [#allocation3], 1
    %156 = vsyncpa [#allocation6], 1
    %157 = vsyncpa [#allocation4], 1

</llo_original>
